<compile_context>
chip_gen: v7x
topology: tpu7x:2x2x1
jax: 0.10.0
libtpu: 0.0.40
codegen_flags: <defaults>
</compile_context>

<pallas_src>
import functools

import numpy as np
import jax
import jax.numpy as jnp
from jax.experimental import pallas as pl
from jax.experimental.pallas import tpu as pltpu


# --------------------------------------------------------------------------- #
# Series-decomposition matrix (host-side, cached)
# --------------------------------------------------------------------------- #
@functools.lru_cache(maxsize=None)
def build_ma_matrix(seq_len: int, window: int) -> np.ndarray:
    """A[l, t] such that trend[:, t] = sum_l x[:, l] * A[l, t]  (centered MA,
    edge-replicated padding: front=(k-1)//2 copies of x[0], end=k//2 of x[-1])."""
    front = (window - 1) // 2
    A = np.zeros((seq_len, seq_len), dtype=np.float32)
    for t in range(seq_len):
        for j in range(window):
            src = min(max(t + j - front, 0), seq_len - 1)
            A[src, t] += 1.0 / window
    return A


def _round_up(x: int, m: int) -> int:
    return ((x + m - 1) // m) * m


def _vmem_bytes(tm: int, l_pad: int, p_pad: int, cbytes: int) -> int:
    # double-buffered x tile + double-buffered f32 out tile
    # + (double-buffered) resident weight + bias
    return (2 * tm * l_pad * cbytes
            + 2 * tm * p_pad * 4
            + 2 * l_pad * p_pad * cbytes
            + 2 * p_pad * 4)


def _choose_tile_rows(R: int, l_pad: int, p_pad: int, cbytes: int,
                      sublane: int) -> int:
    """Row tile: >= 8 grid steps when R is big enough (pipelining + v7x 2-TC
    sharding), capped so the working set stays well inside VMEM on all chips."""
    if R <= 2 * sublane:
        return _round_up(max(R, 1), sublane)
    tm = _round_up(-(-R // 8), sublane)          # aim for ~8 grid steps
    tm = max(sublane, min(tm, 1024))
    while tm > sublane and _vmem_bytes(tm, l_pad, p_pad, cbytes) > (40 << 20):
        tm = _round_up(max(tm // 2, sublane), sublane)
    return tm


# --------------------------------------------------------------------------- #
# Pallas kernel: one lane-dense GEMM + bias tile
# --------------------------------------------------------------------------- #
def _gemm_bias_kernel(x_ref, w_ref, b_ref, o_ref):
    # x_ref : (TM, L_pad)      row tile of flattened (batch, channel) pairs
    # w_ref : (L_pad, P_pad)   fused weight (resident across the grid)
    # b_ref : (1, P_pad)       fused bias, f32 (resident)
    # o_ref : (TM, P_pad)      lane-dense f32 output tile
    acc = jnp.dot(x_ref[...], w_ref[...], preferred_element_type=jnp.float32)
    o_ref[...] = (acc + b_ref[...]).astype(o_ref.dtype)


# --------------------------------------------------------------------------- #
# Forward factory: fuse weights once, return a jitted forward(x)
# --------------------------------------------------------------------------- #
def make_dlinear_forward(params, seq_len, *, window=24,
                         compute_dtype=jnp.bfloat16):
    """Builds W_fused / b_fused once for these params and returns forward(x)
    mapping (B, seq_len, C) f32 -> (B, pred_len, C) f32."""
    Wt, bt, Ws, bs = params                      # Wt/Ws: (P, L), bt/bs: (P,)
    P = int(Wt.shape[0])
    L = int(seq_len)

    cbytes = np.dtype(compute_dtype).itemsize
    sublane = 32 // cbytes                       # 8 for f32, 16 for bf16
    L_pad = _round_up(L, 128)
    P_pad = _round_up(P, 128)

    # ---- fused weight / bias: computed ONCE per params ---------------------
    A = jnp.asarray(build_ma_matrix(L, window))                     # (L, L)
    WtT = Wt.T.astype(jnp.float32)                                  # (L, P)
    WsT = Ws.T.astype(jnp.float32)                                  # (L, P)
    W_fused = A @ (WtT - WsT) + WsT                                 # (L, P) f32
    W_fused = jnp.pad(W_fused, ((0, L_pad - L), (0, P_pad - P)))
    W_fused = jax.device_put(W_fused.astype(compute_dtype))         # (L_pad, P_pad)
    b_fused = (bt + bs).reshape(1, P).astype(jnp.float32)
    b_fused = jax.device_put(jnp.pad(b_fused, ((0, 0), (0, P_pad - P))))

    @jax.jit
    def _fwd(x, w, b):
        B, L_in, C = x.shape
        R = B * C
        TM = _choose_tile_rows(R, L_pad, P_pad, cbytes, sublane)
        R_pad = _round_up(R, TM)

        # (B, L, C) -> (B, C, L) -> (R, L), cast + zero-pad rows/lanes.
        x2d = jnp.transpose(x, (0, 2, 1)).reshape(R, L_in).astype(compute_dtype)
        x2d = jnp.pad(x2d, ((0, R_pad - R), (0, L_pad - L_in)))

        cost = pl.CostEstimate(
            flops=2 * R_pad * L_pad * P_pad,
            transcendentals=0,
            bytes_accessed=(R_pad * L_pad * cbytes            # x stream
                            + L_pad * P_pad * cbytes          # weight
                            + P_pad * 4                       # bias
                            + R_pad * P_pad * 4))             # output

        vmem_limit = int(min(max(_vmem_bytes(TM, L_pad, P_pad, cbytes)
                                 + (8 << 20), 32 << 20), 48 << 20))

        out2d = pl.pallas_call(
            _gemm_bias_kernel,
            out_shape=jax.ShapeDtypeStruct((R_pad, P_pad), jnp.float32),
            grid=(R_pad // TM,),
            in_specs=[
                pl.BlockSpec((TM, L_pad), lambda i: (i, 0)),     # streamed rows
                pl.BlockSpec((L_pad, P_pad), lambda i: (0, 0)),  # resident W
                pl.BlockSpec((1, P_pad), lambda i: (0, 0)),      # resident bias
            ],
            out_specs=pl.BlockSpec((TM, P_pad), lambda i: (i, 0)),
            compiler_params=pltpu.CompilerParams(
                dimension_semantics=("parallel",),
                vmem_limit_bytes=vmem_limit,
            ),
            cost_estimate=cost,
        )(x2d, w, b)

        # (R_pad, P_pad) -> (B*C, P) -> (B, C, P) -> (B, P, C)
        out = out2d[:R, :P].reshape(B, C, P)
        return jnp.transpose(out, (0, 2, 1))

    def forward(x):
        return _fwd(x, W_fused, b_fused)

    return forward


# --------------------------------------------------------------------------- #
# Params init + pure-JAX reference (PyTorch forward semantics)
# --------------------------------------------------------------------------- #
def init_params(key, seq_len, pred_len):
    """Deterministic nn.Linear-style init: U(-1/sqrt(in), 1/sqrt(in))."""
    k1, k2, k3, k4 = jax.random.split(key, 4)
    bound = 1.0 / np.sqrt(seq_len)
    Wt = jax.random.uniform(k1, (pred_len, seq_len), jnp.float32, -bound, bound)
    bt = jax.random.uniform(k2, (pred_len,), jnp.float32, -bound, bound)
    Ws = jax.random.uniform(k3, (pred_len, seq_len), jnp.float32, -bound, bound)
    bs = jax.random.uniform(k4, (pred_len,), jnp.float32, -bound, bound)
    return Wt, bt, Ws, bs


def reference_forward(x, params, *, window=24):
    """Pure-JAX reference reproducing the PyTorch forward (shared head, 'ma')."""
    Wt, bt, Ws, bs = params
    L = x.shape[1]
    A = jnp.asarray(build_ma_matrix(L, window))
    trend = jnp.einsum('blc,lt->btc', x, A)                    # (B, L, C)
    seasonal = x - trend
    t_out = jnp.einsum('blc,pl->bpc', trend, Wt) + bt[None, :, None]
    s_out = jnp.einsum('blc,pl->bpc', seasonal, Ws) + bs[None, :, None]
    return t_out + s_out


# --------------------------------------------------------------------------- #
if __name__ == "__main__":
    B, seq_len, pred_len, C = 2, 16, 8, 4        # enc_in = 4 channels
    key = jax.random.PRNGKey(0)
    kx, kp = jax.random.split(key)

    x = jax.random.normal(kx, (B, seq_len, C), jnp.float32)
    params = init_params(kp, seq_len, pred_len)
    ref = reference_forward(x, params, window=24)

    # f32 compute path: tight correctness check vs the reference.
    fwd_f32 = make_dlinear_forward(params, seq_len, window=24,
                                   compute_dtype=jnp.float32)
    out_f32 = jax.block_until_ready(fwd_f32(x))
    np.testing.assert_allclose(np.asarray(out_f32), np.asarray(ref),
                               rtol=1e-4, atol=1e-4)

    # default bf16 compute path (perf config): loose tolerance check.
    fwd_bf16 = make_dlinear_forward(params, seq_len, window=24,
                                    compute_dtype=jnp.bfloat16)
    out_bf16 = jax.block_until_ready(fwd_bf16(x))
    np.testing.assert_allclose(np.asarray(out_bf16), np.asarray(ref),
                               rtol=2e-2, atol=2e-2)

    assert out_f32.shape == (B, pred_len, C)
    assert out_bf16.shape == (B, pred_len, C)
    print("KERNEL_OK")
</pallas_src>

<mosaic_0001>
module attributes {stable_mosaic.version = 11 : i64} {
  func.func @_gemm_bias_kernel(%arg0: i32, %arg1: memref<8x128xf32, #tpu.memory_space<vmem>>, %arg2: memref<128x128xf32, #tpu.memory_space<vmem>>, %arg3: memref<1x128xf32, #tpu.memory_space<vmem>>, %arg4: memref<8x128xf32, #tpu.memory_space<vmem>>) attributes {dimension_semantics = [#tpu.dimension_semantics<parallel>], iteration_bounds = array<i64: 1>, scalar_prefetch = 0 : i64, scratch_operands = 0 : i64, tpu.core_type = #tpu.core_type<tc>, window_params = [{transform_indices = @transform_0, window_bounds = array<i64: 8, 128>}, {pipeline_mode = #tpu.pipeline_mode<synchronous>, transform_indices = @transform_1, window_bounds = array<i64: 128, 128>}, {pipeline_mode = #tpu.pipeline_mode<synchronous>, transform_indices = @transform_2, window_bounds = array<i64: 1, 128>}, {transform_indices = @transform_3, window_bounds = array<i64: 8, 128>}]} {
    %c0 = arith.constant 0 : index
    %c0_0 = arith.constant 0 : index
    %0 = vector.load %arg1[%c0, %c0_0] : memref<8x128xf32, #tpu.memory_space<vmem>>, vector<8x128xf32>
    %c0_1 = arith.constant 0 : index
    %c0_2 = arith.constant 0 : index
    %1 = vector.load %arg2[%c0_1, %c0_2] : memref<128x128xf32, #tpu.memory_space<vmem>>, vector<128x128xf32>
    %cst = arith.constant dense<0.000000e+00> : vector<8x128xf32>
    %2 = tpu.matmul %0, %1, %cst {dimension_numbers = #tpu.dot_dimension_numbers<[1], [0], [0], [1], [0, 0, 1, 1], [], []>} : vector<8x128xf32>, vector<128x128xf32>, vector<8x128xf32> -> vector<8x128xf32>
    %c0_3 = arith.constant 0 : index
    %c0_4 = arith.constant 0 : index
    %3 = vector.load %arg3[%c0_3, %c0_4] : memref<1x128xf32, #tpu.memory_space<vmem>>, vector<1x128xf32>
    %4 = vector.broadcast %3 : vector<1x128xf32> to vector<8x128xf32>
    %5 = arith.addf %2, %4 : vector<8x128xf32>
    %c0_5 = arith.constant 0 : index
    %c0_6 = arith.constant 0 : index
    %6 = vector.load %arg4[%c0_5, %c0_6] : memref<8x128xf32, #tpu.memory_space<vmem>>, vector<8x128xf32>
    tpu.vector_store %arg4[%c0_5, %c0_6], %5 {strides = array<i32>} : memref<8x128xf32, #tpu.memory_space<vmem>>, vector<8x128xf32>,
    return
  }
  func.func @transform_0(%arg0: i32) -> (i32, i32) {
    %c0_i32 = arith.constant 0 : i32
    %c0_i32_0 = arith.constant 0 : i32
    return %arg0, %c0_i32 : i32, i32
  }
  func.func @transform_1(%arg0: i32) -> (i32, i32) {
    %c0_i32 = arith.constant 0 : i32
    %c0_i32_0 = arith.constant 0 : i32
    %c0_i32_1 = arith.constant 0 : i32
    return %c0_i32, %c0_i32_0 : i32, i32
  }
  func.func @transform_2(%arg0: i32) -> (i32, i32) {
    %c0_i32 = arith.constant 0 : i32
    %c0_i32_0 = arith.constant 0 : i32
    %c0_i32_1 = arith.constant 0 : i32
    return %c0_i32, %c0_i32_0 : i32, i32
  }
  func.func @transform_3(%arg0: i32) -> (i32, i32) {
    %c0_i32 = arith.constant 0 : i32
    %c0_i32_0 = arith.constant 0 : i32
    return %arg0, %c0_i32 : i32, i32
  }
}

</mosaic_0001>

<llo_original>
// kernel: _fwd.1
$region0: #{_fwd.1}
  #allocation0 [shape = 'u32[]', space=smem, size = 0x4, offset = 0x4, fixed_abs, tag = 'smem constant byte address 0x4 - core index']
  #allocation1 [shape = 'u32[144,128]{1,0:T(1,128)}', space=vmem, size = 0x12000, scoped, tag = 'internal scratch']
  %s0 = inlined_call_operand.vmem [shape: f32[8,128], index: 0, kind: input, shape index: {}]
  %s1 = inlined_call_operand.hbm [shape: f32[128,128], index: 1, kind: input, shape index: {}]
  %s2 = inlined_call_operand.vmem [shape: f32[1,128], index: 2, kind: input, shape index: {}]
  %s3 = inlined_call_operand.hbm [shape: f32[8,128], index: 3, kind: output, shape index: {}]
  %s4 = sld [smem:[#allocation0]]
  $region26: #{_fwd.1} parent=0
    _
  %s6 = ssub.s32 1, %s4
  %s7 = scalar_select 0, %s6, %s4
  $region1: #{_fwd.1} parent=0
    #allocation2 [shape = 'u8[65536]{0}', space=vmem, size = 0x10000, scoped, tag = 'input window, operand 1, single buffered']
    #allocation3 [shape = 's32[1]{0}', space=sflag, size = 0x4, scoped, tag = 'scoped memory for _fwd.1']
    #allocation4 [shape = 's32[1]{0}', space=sflag, size = 0x4, scoped, tag = 'scoped memory for _fwd.1']
    #allocation5 [shape = 'u8[4096]{0}', space=vmem, size = 0x1000, scoped, tag = 'output window, operand 0, single buffered']
    %8 = vsyncpa [#allocation3], 0
    %9 = vsyncpa [#allocation4], 0
    // Predicated region
    $region2: #{_fwd.1} parent=1 // pred_check
      _
    $region3: #{_fwd.1} parent=1 // pred_check_branch
      %11 = sbr.rel (0) target = $region5
    $region4: #{_fwd.1} parent=1 // pred_region
      _
    $region5: #{_fwd.1} parent=1 // pred_fallthru
      _
    // Predicated region
    $region6: #{_fwd.1} parent=1 // pred_check
      _
    $region7: #{_fwd.1} parent=1 // pred_check_branch
      %13 = sbr.rel (0) target = $region9
    $region8: #{_fwd.1} parent=1 // pred_region
      %s15 = ssub.s32 2048, 2048
      %16 = vsyncadd [#allocation3], %s15
      %s17 = sshll.u32 [#allocation2], 4
      %s18 = int_to_ptr.vmem [resolvable:$true] %s17
      %23 = dma.hbm_to_vmem [thread:$0]  %s1, 2048, %s18, [#allocation3], 128, 128, 8
    $region9: #{_fwd.1} parent=1 // pred_fallthru
      _
    // Predicated region
    $region10: #{_fwd.1} parent=1 // pred_check
      _
    $region11: #{_fwd.1} parent=1 // pred_check_branch
      %25 = sbr.rel (0) target = $region13
    $region12: #{_fwd.1} parent=1 // pred_region
      _
    $region13: #{_fwd.1} parent=1 // pred_fallthru
      _
    // Predicated region
    $region14: #{_fwd.1} parent=1 // pred_check
      _
    $region15: #{_fwd.1} parent=1 // pred_check_branch
      %27 = sbr.rel (0) target = $region17
    $region16: #{_fwd.1} parent=1 // pred_region
      %28 = dma.done [#allocation3], 2048
    $region17: #{_fwd.1} parent=1 // pred_fallthru
      _
    %v29 = vld [vmem:[%s0] sm:$0xff]
    %v30 = vld [vmem:[#allocation2] sm:$0xff]
    %v31 = vld [vmem:[#allocation2 + $0x8] sm:$0xff]
    %v32 = vld [vmem:[#allocation2 + $0x10] sm:$0xff]
    %v33 = vld [vmem:[#allocation2 + $0x18] sm:$0xff]
    %v34 = vld [vmem:[#allocation2 + $0x20] sm:$0xff]
    %v35 = vld [vmem:[#allocation2 + $0x28] sm:$0xff]
    %v36 = vld [vmem:[#allocation2 + $0x30] sm:$0xff]
    %v37 = vld [vmem:[#allocation2 + $0x38] sm:$0xff]
    %v38 = vld [vmem:[#allocation2 + $0x40] sm:$0xff]
    %v39 = vld [vmem:[#allocation2 + $0x48] sm:$0xff]
    %v40 = vld [vmem:[#allocation2 + $0x50] sm:$0xff]
    %v41 = vld [vmem:[#allocation2 + $0x58] sm:$0xff]
    %v42 = vld [vmem:[#allocation2 + $0x60] sm:$0xff]
    %v43 = vld [vmem:[#allocation2 + $0x68] sm:$0xff]
    %v44 = vld [vmem:[#allocation2 + $0x70] sm:$0xff]
    %v45 = vld [vmem:[#allocation2 + $0x78] sm:$0xff]
    %v46 = vld [vmem:[%s2] sm:$0x1]
    %v48 = vlaneseq
    %v49 = vshrl.u32 %v48, 7
    %v50 = vsub.s32 0, %v49
    %v51 = vrot.slane %v46, %v50
    %53 = vmatprep.subr.mxu0 0.0
    %54 = vmatpush1.msra.mxu0 %v30
    %55 = vmatprep.subr.mxu0 0.0
    %56 = vmatpush1.msra.mxu0 %v31
    %57 = vmatprep.subr.mxu0 0.0
    %58 = vmatpush1.msra.mxu0 %v32
    %59 = vmatprep.subr.mxu0 0.0
    %60 = vmatpush1.msra.mxu0 %v33
    %61 = vmatprep.subr.mxu0 0.0
    %62 = vmatpush1.msra.mxu0 %v34
    %63 = vmatprep.subr.mxu0 0.0
    %64 = vmatpush1.msra.mxu0 %v35
    %65 = vmatprep.subr.mxu0 0.0
    %66 = vmatpush1.msra.mxu0 %v36
    %67 = vmatprep.subr.mxu0 0.0
    %68 = vmatpush1.msra.mxu0 %v37
    %69 = vmatprep.subr.mxu0 0.0
    %70 = vmatpush1.msra.mxu0 %v38
    %71 = vmatprep.subr.mxu0 0.0
    %72 = vmatpush1.msra.mxu0 %v39
    %73 = vmatprep.subr.mxu0 0.0
    %74 = vmatpush1.msra.mxu0 %v40
    %75 = vmatprep.subr.mxu0 0.0
    %76 = vmatpush1.msra.mxu0 %v41
    %77 = vmatprep.subr.mxu0 0.0
    %78 = vmatpush1.msra.mxu0 %v42
    %79 = vmatprep.subr.mxu0 0.0
    %80 = vmatpush1.msra.mxu0 %v43
    %81 = vmatprep.subr.mxu0 0.0
    %82 = vmatpush1.msra.mxu0 %v44
    %83 = vmatprep.subr.mxu0 0.0
    %84 = vmatpush1.msra.mxu0 %v45
    %85 = vmatprep.subr.mxu0 0.0
    %86 = vmatpush1.msra.mxu0 0.0
    %87 = vmatprep.subr.mxu0 0.0
    %88 = vmatpush1.msra.mxu0 0.0
    %89 = vmatprep.subr.mxu0 0.0
    %90 = vmatpush1.msra.mxu0 0.0
    %91 = vmatprep.subr.mxu0 0.0
    %92 = vmatpush1.msra.mxu0 0.0
    %93 = vmatprep.subr.mxu0 0.0
    %94 = vmatpush1.msra.mxu0 0.0
    %95 = vmatprep.subr.mxu0 0.0
    %96 = vmatpush1.msra.mxu0 0.0
    %97 = vmatprep.subr.mxu0 0.0
    %98 = vmatpush1.msra.mxu0 0.0
    %99 = vmatprep.subr.mxu0 0.0
    %100 = vmatpush1.msra.mxu0 0.0
    %101 = vmatprep.subr.mxu0 0.0
    %102 = vmatpush1.msra.mxu0 0.0
    %103 = vmatprep.subr.mxu0 0.0
    %104 = vmatpush1.msra.mxu0 0.0
    %105 = vmatprep.subr.mxu0 0.0
    %106 = vmatpush1.msra.mxu0 0.0
    %107 = vmatprep.subr.mxu0 0.0
    %108 = vmatpush1.msra.mxu0 0.0
    %109 = vmatprep.subr.mxu0 0.0
    %110 = vmatpush1.msra.mxu0 0.0
    %111 = vmatprep.subr.mxu0 0.0
    %112 = vmatpush1.msra.mxu0 0.0
    %113 = vmatprep.subr.mxu0 0.0
    %114 = vmatpush1.msra.mxu0 0.0
    %115 = vmatprep.subr.mxu0 0.0
    %116 = vmatpush1.msra.mxu0 0.0
    %117 = vmatprep.mubr.f32.mxu0 0.0
    %118 = vmatmul.mubr.f32.gmra.mrb[0].mxu0 %v29
    %v119 = vpop.f32.mrb[0].mxu0
    %v120 = vadd.f32 %v51, %v119
    %v121 = vpop.f32.mrb[0].mxu0
    %122 = vdwg.mxu0
    %123 = vst [vmem:[#allocation5] sm:$0xff] %v120
    // Predicated region
    $region18: #{_fwd.1} parent=1 // pred_check
      _
    $region19: #{_fwd.1} parent=1 // pred_check_branch
      %125 = sbr.rel (0) target = $region21
    $region20: #{_fwd.1} parent=1 // pred_region
      %s127 = ssub.s32 128, 128
      %128 = vsyncadd [#allocation4], %s127
      %s130 = sshll.u32 [#allocation5], 4
      %s131 = int_to_ptr.vmem [resolvable:$true] %s130
      %133 = dma.vmem_to_hbm [thread:$0]  %s131, 128, %s3, [#allocation4]
    $region21: #{_fwd.1} parent=1 // pred_fallthru
      _
    // Predicated region
    $region22: #{_fwd.1} parent=1 // pred_check
      _
    $region23: #{_fwd.1} parent=1 // pred_check_branch
      %135 = sbr.rel (0) target = $region25
    $region24: #{_fwd.1} parent=1 // pred_region
      %136 = dma.done [#allocation4], 128
    $region25: #{_fwd.1} parent=1 // pred_fallthru
      _
    %137 = vsyncpa [#allocation3], 1
    %138 = vsyncpa [#allocation4], 1

</llo_original>
